<compile_context>
chip_gen: v6e
topology: v6e:2x2x1
jax: 0.10.0
libtpu: 0.0.40
codegen_flags: <defaults>
</compile_context>

<pallas_src>
import functools

import jax
import jax.numpy as jnp
from jax.experimental import pallas as pl
from jax.experimental.pallas import tpu as pltpu


def _output_attention_kernel(h_ref, madd_ref, wqv_ref, bv_ref, expand_ref,
                             out_ref, *, num_heads, value_size):
    """One grid step processes TB batch rows.

    h_ref:      [TB, S, Dh]        bf16 hidden states
    madd_ref:   [TB, S, 1]         f32 additive mask, (mask - 1) * 10000
    wqv_ref:    [Dh, nh + nh*vs]   bf16 fused [Wq | Wv] weight (resident)
    bv_ref:     [1, nh*vs]         f32 value bias (query bias is a softmax no-op)
    expand_ref: [nh, nh*vs]        f32 constant head->(head,value) expansion (resident)
    out_ref:    [TB, nh*vs]        f32
    """
    nh, vs = num_heads, value_size
    out_dim = nh * vs
    TB, S, Dh = h_ref.shape

    # Fused Q|V projection for the whole batch tile: bf16 operands straight to
    # the MXU, f32 accumulation.  Leading-dim reshape is layout-free.
    h2d = h_ref[...].reshape(TB * S, Dh)
    qv = jnp.dot(h2d, wqv_ref[...], preferred_element_type=jnp.float32)
    qv = qv.reshape(TB, S, nh + out_dim)
    q = qv[:, :, :nh]                                    # [TB, S, nh]
    v = qv[:, :, nh:]                                    # [TB, S, nh*vs]

    # Masked, shift-stabilized exponentials (f32); normalization is deferred.
    logits = q + madd_ref[...]                           # lane-broadcast of [TB,S,1]
    m = jnp.max(logits, axis=1, keepdims=True)           # [TB, 1, nh]
    e = jnp.exp(logits - m)                              # [TB, S, nh]

    # Expand per-head exponentials to per-(head, value) columns with the tiny
    # resident constant matmul (avoids lane-relayout repeats), then one
    # weighted reduce over the sequence.
    e_rep = jnp.dot(e.reshape(TB * S, nh), expand_ref[...],
                    preferred_element_type=jnp.float32).reshape(TB, S, out_dim)
    acc = jnp.sum(e_rep * v, axis=1)                     # un-normalized output
    denom = jnp.sum(e_rep, axis=1)                       # softmax denom per column

    # Deferred normalization on the small [TB, out_dim] result; the reciprocal
    # rides the otherwise-idle EUP slot.
    out = acc * pl.reciprocal(denom, approx=True) + bv_ref[...]
    out_ref[...] = out.astype(out_ref.dtype)


def _vmem_limit_bytes():
    """Scoped-VMEM limit per generation (~96 MiB on v5e/v6e, ~48 MiB on v7x)."""
    try:
        cap = int(pltpu.get_tpu_info().vmem_capacity_bytes)
    except Exception:
        cap = 64 * 1024 * 1024          # conservative fallback (v7x per-TC VMEM)
    return min(cap * 3 // 4, 100 * 1024 * 1024)


def _pick_batch_tile(B, S, Dh, nh, out_dim, budget_bytes):
    """Largest batch tile whose per-step VMEM footprint fits the budget."""
    lanes = lambda n: pl.cdiv(n, 128) * 128
    per_row = (
        2 * S * Dh * 2                        # H block (bf16), double-buffered
        + 2 * S * lanes(1) * 4                # additive-mask block (f32, lane-padded to 128)
        + 2 * lanes(out_dim) * 4              # output block (f32), double-buffered
        + S * (lanes(nh + out_dim)            # qv           } f32 intermediates live
               + lanes(nh)                    # e            } inside the kernel body
               + 2 * lanes(out_dim)) * 4      # v, e_rep     }
    )
    fixed = (2 * Dh * lanes(nh + out_dim) * 2     # Wqv (bf16, resident)
             + 4 * 8 * lanes(out_dim) * 4)        # bv + expand (f32, resident)
    tb = max(1, (budget_bytes - fixed) // per_row)
    if B >= 16:
        # Keep at least two grid steps so both v7x TensorCores get work.
        tb = min(tb, pl.cdiv(pl.cdiv(B, 2), 8) * 8)
    if tb >= B:
        return B                                   # single step: blocks = full batch dim
    tb = max(8, (tb // 8) * 8)                     # sublane-aligned batch tile
    return min(tb, B)


def output_attention(H, attention_mask, W, b, *, num_heads, value_size,
                     batch_tile=None):
    """H: [B, S, hidden]; attention_mask: [B, S];
    W: [hidden, nh*(1+vs)] (PyTorch weight transposed); b: [nh*(1+vs)]."""
    B, S, Dh = H.shape
    total = 1 + value_size
    out_dim = num_heads * value_size

    # ---- weight glue: fused [Wq | Wv] projection (bf16), value bias only ----
    W3 = W.reshape(Dh, num_heads, total)
    b2 = b.reshape(num_heads, total)
    Wq = W3[:, :, 0]                                      # [Dh, nh]
    Wv = W3[:, :, 1:].reshape(Dh, out_dim)                # [Dh, nh*vs]
    Wqv = jnp.concatenate([Wq, Wv], axis=1).astype(jnp.bfloat16)
    bv = b2[:, 1:].reshape(1, out_dim).astype(jnp.float32)
    # Query bias dropped: softmax over seq is shift-invariant per head.

    # Constant head -> (head, value) expansion, hoisted out of the grid loop.
    expand = (jnp.arange(out_dim)[None, :] // value_size
              == jnp.arange(num_heads)[:, None]).astype(jnp.float32)

    # Additive mask, [B, S, 1] so it lane-broadcasts against [TB, S, nh] logits.
    madd = ((attention_mask.astype(jnp.float32) - 1.0) * 10000.0)[:, :, None]

    # ---- pad S to a sublane multiple; padded positions are hard-masked ------
    Sp = pl.cdiv(S, 8) * 8
    if Sp != S:
        H = jnp.pad(H, ((0, 0), (0, Sp - S), (0, 0)))
        madd = jnp.pad(madd, ((0, 0), (0, Sp - S), (0, 0)),
                       constant_values=-1e9)   # exp underflows to exactly 0

    # ---- pick the batch tile from the per-generation VMEM budget ------------
    vmem_limit = _vmem_limit_bytes()
    if batch_tile is None:
        TB = _pick_batch_tile(B, Sp, Dh, num_heads, out_dim,
                              int(vmem_limit * 0.8))
    else:
        TB = max(1, min(batch_tile, B))
    Bp = pl.cdiv(B, TB) * TB
    if Bp != B:
        H = jnp.pad(H, ((0, Bp - B), (0, 0), (0, 0)))
        madd = jnp.pad(madd, ((0, Bp - B), (0, 0), (0, 0)))  # unmasked: finite, sliced off

    H = H.astype(jnp.bfloat16)   # bf16 halves HBM traffic; matmul accumulates in f32

    kernel = functools.partial(_output_attention_kernel,
                               num_heads=num_heads, value_size=value_size)

    out = pl.pallas_call(
        kernel,
        out_shape=jax.ShapeDtypeStruct((Bp, out_dim), jnp.float32),
        grid=(Bp // TB,),
        in_specs=[
            pl.BlockSpec((TB, Sp, Dh), lambda i: (i, 0, 0)),              # H tile
            pl.BlockSpec((TB, Sp, 1), lambda i: (i, 0, 0)),               # mask tile
            pl.BlockSpec((Dh, num_heads + out_dim), lambda i: (0, 0)),    # Wqv (resident)
            pl.BlockSpec((1, out_dim), lambda i: (0, 0)),                 # bv (resident)
            pl.BlockSpec((num_heads, out_dim), lambda i: (0, 0)),         # expand (resident)
        ],
        out_specs=pl.BlockSpec((TB, out_dim), lambda i: (i, 0)),
        compiler_params=pltpu.CompilerParams(
            dimension_semantics=("parallel",),
            vmem_limit_bytes=vmem_limit),
    )(H, madd, Wqv, bv, expand)

    return out[:B]


def output_attention_ref(H, attention_mask, W, b, *, num_heads, value_size):
    """Pure-JAX f32 reference mirroring the PyTorch forward."""
    B, S, Dh = H.shape
    total = 1 + value_size
    H2 = (H @ W + b).reshape(B, S, num_heads, total).transpose(0, 2, 1, 3)  # [B,nh,S,1+vs]
    Q = H2[..., 0]                                                          # [B,nh,S]
    V = H2[..., 1:]                                                         # [B,nh,S,vs]
    logits = Q + ((attention_mask - 1.0) * 10000.0)[:, None, :]
    probs = jax.nn.softmax(logits, axis=-1)                                 # [B,nh,S]
    out = jnp.einsum('bhs,bhsv->bhv', probs, V)                             # [B,nh,vs]
    return out.reshape(B, num_heads * value_size)


if __name__ == "__main__":
    # Small, deterministic config.
    B, S, hidden = 2, 8, 32
    num_heads, value_size = 4, 8
    total = 1 + value_size

    key = jax.random.PRNGKey(0)
    k_h, k_w, k_b, k_m = jax.random.split(key, 4)

    H = jax.random.normal(k_h, (B, S, hidden), dtype=jnp.float32)
    # Linear params ([hidden, out] layout == PyTorch weight transposed).
    W = jax.random.normal(k_w, (hidden, num_heads * total), dtype=jnp.float32) * 0.1
    b = jax.random.normal(k_b, (num_heads * total,), dtype=jnp.float32) * 0.1
    # Mask: first row masks the tail of the sequence, second is fully allowed.
    attention_mask = jnp.stack([
        jnp.concatenate([jnp.ones((S - 3,), jnp.float32), jnp.zeros((3,), jnp.float32)]),
        jnp.ones((S,), jnp.float32),
    ], axis=0)                                                              # [B, S]

    out = output_attention(H, attention_mask, W, b,
                           num_heads=num_heads, value_size=value_size)
    out = jax.block_until_ready(out)

    ref = output_attention_ref(H, attention_mask, W, b,
                               num_heads=num_heads, value_size=value_size)
    assert out.shape == (B, num_heads * value_size)
    # Tolerance covers bf16 matmul inputs + approximate (EUP) reciprocal vs the
    # pure-f32 reference; structural errors would be O(1).
    assert jnp.allclose(out, ref, atol=3e-2, rtol=3e-2), "mismatch vs reference"

    print("KERNEL_OK")
</pallas_src>

<mosaic_0001>
module attributes {stable_mosaic.version = 11 : i64} {
  func.func @_output_attention_kernel(%arg0: i32, %arg1: memref<2x8x32xbf16, #tpu.memory_space<vmem>>, %arg2: memref<2x8x1xf32, #tpu.memory_space<vmem>>, %arg3: memref<32x36xbf16, #tpu.memory_space<vmem>>, %arg4: memref<1x32xf32, #tpu.memory_space<vmem>>, %arg5: memref<4x32xf32, #tpu.memory_space<vmem>>, %arg6: memref<2x32xf32, #tpu.memory_space<vmem>>) attributes {dimension_semantics = [#tpu.dimension_semantics<parallel>], iteration_bounds = array<i64: 1>, scalar_prefetch = 0 : i64, scratch_operands = 0 : i64, tpu.core_type = #tpu.core_type<tc>, window_params = [{transform_indices = @transform_0, window_bounds = array<i64: 2, 8, 32>}, {transform_indices = @transform_1, window_bounds = array<i64: 2, 8, 1>}, {pipeline_mode = #tpu.pipeline_mode<synchronous>, transform_indices = @transform_2, window_bounds = array<i64: 32, 36>}, {pipeline_mode = #tpu.pipeline_mode<synchronous>, transform_indices = @transform_3, window_bounds = array<i64: 1, 32>}, {pipeline_mode = #tpu.pipeline_mode<synchronous>, transform_indices = @transform_4, window_bounds = array<i64: 4, 32>}, {transform_indices = @transform_5, window_bounds = array<i64: 2, 32>}]} {
    %c0 = arith.constant 0 : index
    %c0_0 = arith.constant 0 : index
    %c0_1 = arith.constant 0 : index
    %0 = vector.load %arg1[%c0, %c0_0, %c0_1] : memref<2x8x32xbf16, #tpu.memory_space<vmem>>, vector<2x8x32xbf16>
    %1 = vector.shape_cast %0 : vector<2x8x32xbf16> to vector<16x32xbf16>
    %c0_2 = arith.constant 0 : index
    %c0_3 = arith.constant 0 : index
    %2 = vector.load %arg3[%c0_2, %c0_3] : memref<32x36xbf16, #tpu.memory_space<vmem>>, vector<32x36xbf16>
    %cst = arith.constant dense<0.000000e+00> : vector<16x36xf32>
    %3 = tpu.matmul %1, %2, %cst {dimension_numbers = #tpu.dot_dimension_numbers<[1], [0], [0], [1], [0, 0, 1, 1], [], []>} : vector<16x32xbf16>, vector<32x36xbf16>, vector<16x36xf32> -> vector<16x36xf32>
    %4 = vector.shape_cast %3 : vector<16x36xf32> to vector<2x8x36xf32>
    %5 = vector.extract_strided_slice %4 {offsets = [0, 0, 0], sizes = [2, 8, 4], strides = [1, 1, 1]} : vector<2x8x36xf32> to vector<2x8x4xf32>
    %6 = vector.extract_strided_slice %4 {offsets = [0, 0, 4], sizes = [2, 8, 32], strides = [1, 1, 1]} : vector<2x8x36xf32> to vector<2x8x32xf32>
    %c0_4 = arith.constant 0 : index
    %c0_5 = arith.constant 0 : index
    %c0_6 = arith.constant 0 : index
    %7 = vector.load %arg2[%c0_4, %c0_5, %c0_6] : memref<2x8x1xf32, #tpu.memory_space<vmem>>, vector<2x8x1xf32>
    %8 = vector.broadcast %7 : vector<2x8x1xf32> to vector<2x8x4xf32>
    %9 = arith.addf %5, %8 : vector<2x8x4xf32>
    %cst_7 = arith.constant dense<0xFF800000> : vector<2x4xf32>
    %10 = vector.multi_reduction <maximumf>, %9, %cst_7 [1] : vector<2x8x4xf32> to vector<2x4xf32>
    %11 = vector.shape_cast %10 : vector<2x4xf32> to vector<2x1x4xf32>
    %12 = vector.broadcast %11 : vector<2x1x4xf32> to vector<2x8x4xf32>
    %13 = arith.subf %9, %12 : vector<2x8x4xf32>
    %14 = math.exp %13 : vector<2x8x4xf32>
    %15 = vector.shape_cast %14 : vector<2x8x4xf32> to vector<16x4xf32>
    %c0_8 = arith.constant 0 : index
    %c0_9 = arith.constant 0 : index
    %16 = vector.load %arg5[%c0_8, %c0_9] : memref<4x32xf32, #tpu.memory_space<vmem>>, vector<4x32xf32>
    %cst_10 = arith.constant dense<0.000000e+00> : vector<16x32xf32>
    %17 = tpu.matmul %15, %16, %cst_10 {dimension_numbers = #tpu.dot_dimension_numbers<[1], [0], [0], [1], [0, 0, 1, 1], [], []>} : vector<16x4xf32>, vector<4x32xf32>, vector<16x32xf32> -> vector<16x32xf32>
    %18 = vector.shape_cast %17 : vector<16x32xf32> to vector<2x8x32xf32>
    %19 = arith.mulf %18, %6 : vector<2x8x32xf32>
    %cst_11 = arith.constant dense<0.000000e+00> : vector<2x32xf32>
    %20 = vector.multi_reduction <add>, %19, %cst_11 [1] : vector<2x8x32xf32> to vector<2x32xf32>
    %cst_12 = arith.constant dense<0.000000e+00> : vector<2x32xf32>
    %21 = vector.multi_reduction <add>, %18, %cst_12 [1] : vector<2x8x32xf32> to vector<2x32xf32>
    %22 = tpu.reciprocal %21 {approx = true} : vector<2x32xf32> -> vector<2x32xf32>
    %23 = arith.mulf %20, %22 : vector<2x32xf32>
    %c0_13 = arith.constant 0 : index
    %c0_14 = arith.constant 0 : index
    %24 = vector.load %arg4[%c0_13, %c0_14] : memref<1x32xf32, #tpu.memory_space<vmem>>, vector<1x32xf32>
    %25 = vector.broadcast %24 : vector<1x32xf32> to vector<2x32xf32>
    %26 = arith.addf %23, %25 : vector<2x32xf32>
    %c0_15 = arith.constant 0 : index
    %c0_16 = arith.constant 0 : index
    %27 = vector.load %arg6[%c0_15, %c0_16] : memref<2x32xf32, #tpu.memory_space<vmem>>, vector<2x32xf32>
    tpu.vector_store %arg6[%c0_15, %c0_16], %26 {strides = array<i32>} : memref<2x32xf32, #tpu.memory_space<vmem>>, vector<2x32xf32>,
    return
  }
  func.func @transform_0(%arg0: i32) -> (i32, i32, i32) {
    %c0_i32 = arith.constant 0 : i32
    %c0_i32_0 = arith.constant 0 : i32
    %c0_i32_1 = arith.constant 0 : i32
    return %arg0, %c0_i32, %c0_i32_0 : i32, i32, i32
  }
  func.func @transform_1(%arg0: i32) -> (i32, i32, i32) {
    %c0_i32 = arith.constant 0 : i32
    %c0_i32_0 = arith.constant 0 : i32
    %c0_i32_1 = arith.constant 0 : i32
    return %arg0, %c0_i32, %c0_i32_0 : i32, i32, i32
  }
  func.func @transform_2(%arg0: i32) -> (i32, i32) {
    %c0_i32 = arith.constant 0 : i32
    %c0_i32_0 = arith.constant 0 : i32
    %c0_i32_1 = arith.constant 0 : i32
    return %c0_i32, %c0_i32_0 : i32, i32
  }
  func.func @transform_3(%arg0: i32) -> (i32, i32) {
    %c0_i32 = arith.constant 0 : i32
    %c0_i32_0 = arith.constant 0 : i32
    %c0_i32_1 = arith.constant 0 : i32
    return %c0_i32, %c0_i32_0 : i32, i32
  }
  func.func @transform_4(%arg0: i32) -> (i32, i32) {
    %c0_i32 = arith.constant 0 : i32
    %c0_i32_0 = arith.constant 0 : i32
    %c0_i32_1 = arith.constant 0 : i32
    return %c0_i32, %c0_i32_0 : i32, i32
  }
  func.func @transform_5(%arg0: i32) -> (i32, i32) {
    %c0_i32 = arith.constant 0 : i32
    %c0_i32_0 = arith.constant 0 : i32
    return %arg0, %c0_i32 : i32, i32
  }
}

</mosaic_0001>

<llo_original>
// kernel: tpu_custom_call.1
$region0: #{tpu_custom_call.1}
  #allocation0 [shape = 'u32[]', space=smem, size = 0x4, offset = 0x4, fixed_abs, tag = 'smem constant byte address 0x4 - core index']
  #allocation1 [shape = 'u32[144,128]{1,0:T(1,128)}', space=vmem, size = 0x12000, scoped, tag = 'internal scratch']
  %s0 = inlined_call_operand.hbm [shape: bf16[2,8,32], index: 0, kind: input, shape index: {}]
  %s1 = inlined_call_operand.vmem [shape: f32[2,8,1], index: 1, kind: input, shape index: {}]
  %s2 = inlined_call_operand.vmem [shape: bf16[32,36], index: 2, kind: input, shape index: {}]
  %s3 = inlined_call_operand.vmem [shape: f32[1,32], index: 3, kind: input, shape index: {}]
  %s4 = inlined_call_operand.vmem [shape: f32[4,32], index: 4, kind: input, shape index: {}]
  %s5 = inlined_call_operand.hbm [shape: f32[2,32], index: 5, kind: output, shape index: {}]
  %s6 = sld [smem:[#allocation0]]
  $region34: #{tpu_custom_call.1} parent=0
    _
  %s8 = ssub.s32 1, %s6
  %s9 = scalar_select 0, %s8, %s6
  $region1: #{tpu_custom_call.1} parent=0
    #allocation2 [shape = 'u8[4096]{0}', space=vmem, size = 0x1000, scoped, tag = 'input window, operand 0, single buffered']
    #allocation3 [shape = 's32[1]{0}', space=sflag, size = 0x4, scoped, tag = 'scoped memory for tpu_custom_call.1']
    #allocation4 [shape = 's32[1]{0}', space=sflag, size = 0x4, scoped, tag = 'scoped memory for tpu_custom_call.1']
    #allocation5 [shape = 'u8[1024]{0}', space=vmem, size = 0x400, scoped, tag = 'output window, operand 0, single buffered']
    %10 = vsyncpa [#allocation3], 0
    %11 = vsyncpa [#allocation4], 0
    // Predicated region
    $region2: #{tpu_custom_call.1} parent=1 // pred_check
      _
    $region3: #{tpu_custom_call.1} parent=1 // pred_check_branch
      %13 = sbr.rel (0) target = $region5
    $region4: #{tpu_custom_call.1} parent=1 // pred_region
      %s15 = ssub.s32 128, 128
      %16 = vsyncadd [#allocation3], %s15
      %s17 = sshll.u32 [#allocation2], 4
      %s18 = int_to_ptr.vmem [resolvable:$true] %s17
      %23 = dma.hbm_to_vmem [thread:$0]  %s0, 128, %s18, [#allocation3], 64, 64, 4
    $region5: #{tpu_custom_call.1} parent=1 // pred_fallthru
      _
    // Predicated region
    $region6: #{tpu_custom_call.1} parent=1 // pred_check
      _
    $region7: #{tpu_custom_call.1} parent=1 // pred_check_branch
      %25 = sbr.rel (0) target = $region9
    $region8: #{tpu_custom_call.1} parent=1 // pred_region
      _
    $region9: #{tpu_custom_call.1} parent=1 // pred_fallthru
      _
    // Predicated region
    $region10: #{tpu_custom_call.1} parent=1 // pred_check
      _
    $region11: #{tpu_custom_call.1} parent=1 // pred_check_branch
      %27 = sbr.rel (0) target = $region13
    $region12: #{tpu_custom_call.1} parent=1 // pred_region
      _
    $region13: #{tpu_custom_call.1} parent=1 // pred_fallthru
      _
    // Predicated region
    $region14: #{tpu_custom_call.1} parent=1 // pred_check
      _
    $region15: #{tpu_custom_call.1} parent=1 // pred_check_branch
      %29 = sbr.rel (0) target = $region17
    $region16: #{tpu_custom_call.1} parent=1 // pred_region
      _
    $region17: #{tpu_custom_call.1} parent=1 // pred_fallthru
      _
    // Predicated region
    $region18: #{tpu_custom_call.1} parent=1 // pred_check
      _
    $region19: #{tpu_custom_call.1} parent=1 // pred_check_branch
      %31 = sbr.rel (0) target = $region21
    $region20: #{tpu_custom_call.1} parent=1 // pred_region
      _
    $region21: #{tpu_custom_call.1} parent=1 // pred_fallthru
      _
    // Predicated region
    $region22: #{tpu_custom_call.1} parent=1 // pred_check
      _
    $region23: #{tpu_custom_call.1} parent=1 // pred_check_branch
      %33 = sbr.rel (0) target = $region25
    $region24: #{tpu_custom_call.1} parent=1 // pred_region
      %34 = dma.done [#allocation3], 128
    $region25: #{tpu_custom_call.1} parent=1 // pred_fallthru
      _
    %v36 = vld [vmem:[#allocation2] sm:$0xf]
    %v37 = vld [vmem:[#allocation2 + $0x4] sm:$0xf]
    %v38 = vld [vmem:[%s2] sm:$0xf]
    %v39 = vld [vmem:[%s2 + $0x4] sm:$0xf]
    %v40 = vld [vmem:[%s2 + $0x8] sm:$0xf]
    %v41 = vld [vmem:[%s2 + $0xc] sm:$0xf]
    %v44 = vunpack.c.l.b16 %v36
    %v45 = vunpack.c.l.b16 %v37
    %v46 = vpack.c.b16 %v45, %v44
    %v51 = vunpack.c.l.b16 %v38
    %v52 = vunpack.c.l.b16 %v39
    %v53 = vunpack.c.l.b16 %v40
    %v54 = vunpack.c.l.b16 %v41
    %v55 = vpack.c.b16 %v52, %v51
    %v56 = vpack.c.b16 %v54, %v53
    %vm59 = vcmask 261120
    %v61 = vsel %vm59, %v46, 0
    %63 = vmatprep.subr.bf16.mxu0 0
    %64 = vmatpush1.bf16.msra.mxu0 0
    %65 = vmatprep.subr.bf16.mxu0 0
    %66 = vmatpush1.bf16.msra.mxu0 0
    %67 = vmatprep.subr.bf16.mxu0 0
    %68 = vmatpush1.bf16.msra.mxu0 0
    %69 = vmatprep.subr.bf16.mxu0 0
    %70 = vmatpush1.bf16.msra.mxu0 0
    %71 = vmatprep.subr.bf16.mxu0 0
    %72 = vmatpush1.bf16.msra.mxu0 0
    %73 = vmatprep.subr.bf16.mxu0 0
    %74 = vmatpush1.bf16.msra.mxu0 0
    %75 = vmatprep.subr.bf16.mxu0 0
    %76 = vmatpush1.bf16.msra.mxu0 %v56
    %77 = vmatprep.subr.bf16.mxu0 0
    %78 = vmatpush1.bf16.msra.mxu0 %v55
    %79 = vmatprep.subr.bf16.mxu0 0
    %80 = vmatpush2.bf16.msra.mxu0 0
    %81 = vmatprep.subr.bf16.mxu0 0
    %82 = vmatpush2.bf16.msra.mxu0 0
    %83 = vmatprep.subr.bf16.mxu0 0
    %84 = vmatpush2.bf16.msra.mxu0 0
    %85 = vmatprep.subr.bf16.mxu0 0
    %86 = vmatpush2.bf16.msra.mxu0 0
    %87 = vmatprep.subr.bf16.mxu0 0
    %88 = vmatpush2.bf16.msra.mxu0 0
    %89 = vmatprep.subr.bf16.mxu0 0
    %90 = vmatpush2.bf16.msra.mxu0 0
    %91 = vmatprep.subr.bf16.mxu0 0
    %92 = vmatpush2.bf16.msra.mxu0 0
    %93 = vmatprep.subr.bf16.mxu0 0
    %94 = vmatpush2.bf16.msra.mxu0 0
    %95 = vmatprep.mubr.bf16.mxu0 0
    %96 = vmatmul.mubr.bf16.gmra.mxu0 %v61
    %v97 = vpop.f32.mrf.mxu0
    %v98 = vadd.f32 0.0, %v97
    %v99 = vpop.f32.mrf.mxu0
    %v100 = vpop.f32.mrf.mxu0
    %v101 = vadd.f32 0.0, %v100
    %v102 = vpop.f32.mrf.mxu0
    %103 = vdwg.mxu0
    %v104 = vld [vmem:[%s1] sm:$0xff]
    %v105 = vld [vmem:[%s1 + $0x8] sm:$0xff]
    %107 = vset.pattern.permute.xlu0 0
    %108 = vperm.xlu0 %107, %v104
    %v109 = vpop.permute.xlu0 %108
    %112 = vset.pattern.permute.xlu0 0
    %113 = vperm.xlu0 %112, %v105
    %v114 = vpop.permute.xlu0 %113
    %v116 = vadd.f32 %v98, %v109
    %v117 = vadd.f32 %v101, %v114
    %vm118 = vcmask 31744
    %v119 = vsel %vm118, %v116, -inf
    %v120 = vrot.slane %v119, 4
    %v121 = vmax.f32 %v119, %v120
    %v122 = vrot.slane %v121, 2
    %v123 = vmax.f32 %v121, %v122
    %v124 = vrot.slane %v123, 1
    %v125 = vmax.f32 %v123, %v124
    %v126 = vsel %vm118, %v117, -inf
    %v127 = vrot.slane %v126, 4
    %v128 = vmax.f32 %v126, %v127
    %v129 = vrot.slane %v128, 2
    %v130 = vmax.f32 %v128, %v129
    %v131 = vrot.slane %v130, 1
    %v132 = vmax.f32 %v130, %v131
    %v133 = vsub.f32 %v116, %v125
    %v134 = vsub.f32 %v117, %v132
    %v135 = vmul.f32 %v133, 1.442695
    %v136 = vpow.pop %v135
    %v137 = vmul.f32 %v134, 1.442695
    %v138 = vpow.pop %v137
    %v139 = vld [vmem:[%s4] sm:$0xf]
    %v141 = vsel %vm118, %v136, 0
    %v144 = vsel %vm118, %v138, 0
    %vm146 = vcmask 1043456
    %v148 = vsel %vm146, %v139, 0
    %150 = vmatprep.subr.mxu0 0.0
    %151 = vmatpush1.msra.mxu0 0.0
    %152 = vmatprep.subr.mxu0 0.0
    %153 = vmatpush1.msra.mxu0 0.0
    %154 = vmatprep.subr.mxu0 0.0
    %155 = vmatpush1.msra.mxu0 0.0
    %156 = vmatprep.subr.mxu0 0.0
    %157 = vmatpush1.msra.mxu0 0.0
    %158 = vmatprep.subr.mxu0 0.0
    %159 = vmatpush1.msra.mxu0 0.0
    %160 = vmatprep.subr.mxu0 0.0
    %161 = vmatpush1.msra.mxu0 0.0
    %162 = vmatprep.subr.mxu0 0.0
    %163 = vmatpush1.msra.mxu0 0.0
    %164 = vmatprep.subr.mxu0 0.0
    %165 = vmatpush1.msra.mxu0 0.0
    %166 = vmatprep.subr.mxu0 0.0
    %167 = vmatpush1.msra.mxu0 0.0
    %168 = vmatprep.subr.mxu0 0.0
    %169 = vmatpush1.msra.mxu0 0.0
    %170 = vmatprep.subr.mxu0 0.0
    %171 = vmatpush1.msra.mxu0 0.0
    %172 = vmatprep.subr.mxu0 0.0
    %173 = vmatpush1.msra.mxu0 0.0
    %174 = vmatprep.subr.mxu0 0.0
    %175 = vmatpush1.msra.mxu0 0.0
    %176 = vmatprep.subr.mxu0 0.0
    %177 = vmatpush1.msra.mxu0 0.0
    %178 = vmatprep.subr.mxu0 0.0
    %179 = vmatpush1.msra.mxu0 0.0
    %180 = vmatprep.subr.mxu0 0.0
    %181 = vmatpush1.msra.mxu0 %v148
    %182 = vmatprep.subr.mxu0 0.0
    %183 = vmatpush2.msra.mxu0 0.0
    %184 = vmatprep.subr.mxu0 0.0
    %185 = vmatpush2.msra.mxu0 0.0
    %186 = vmatprep.subr.mxu0 0.0
    %187 = vmatpush2.msra.mxu0 0.0
    %188 = vmatprep.subr.mxu0 0.0
    %189 = vmatpush2.msra.mxu0 0.0
    %190 = vmatprep.subr.mxu0 0.0
    %191 = vmatpush2.msra.mxu0 0.0
    %192 = vmatprep.subr.mxu0 0.0
    %193 = vmatpush2.msra.mxu0 0.0
    %194 = vmatprep.subr.mxu0 0.0
    %195 = vmatpush2.msra.mxu0 0.0
    %196 = vmatprep.subr.mxu0 0.0
    %197 = vmatpush2.msra.mxu0 0.0
    %198 = vmatprep.subr.mxu0 0.0
    %199 = vmatpush2.msra.mxu0 0.0
    %200 = vmatprep.subr.mxu0 0.0
    %201 = vmatpush2.msra.mxu0 0.0
    %202 = vmatprep.subr.mxu0 0.0
    %203 = vmatpush2.msra.mxu0 0.0
    %204 = vmatprep.subr.mxu0 0.0
    %205 = vmatpush2.msra.mxu0 0.0
    %206 = vmatprep.subr.mxu0 0.0
    %207 = vmatpush2.msra.mxu0 0.0
    %208 = vmatprep.subr.mxu0 0.0
    %209 = vmatpush2.msra.mxu0 0.0
    %210 = vmatprep.subr.mxu0 0.0
    %211 = vmatpush2.msra.mxu0 0.0
    %212 = vmatprep.subr.mxu0 0.0
    %213 = vmatpush2.msra.mxu0 0.0
    %214 = vmatprep.mubr.f32.mxu0 0.0
    %215 = vmatmul.mubr.f32.gmra.mxu0 %v141
    %v216 = vpop.f32.mrf.mxu0
    %v217 = vadd.f32 0.0, %v216
    %v218 = vpop.f32.mrf.mxu0
    %219 = vmatprep.mubr.f32.mxu0 0.0
    %220 = vmatmul.mubr.f32.gmra.mxu0 %v144
    %v221 = vpop.f32.mrf.mxu0
    %v222 = vadd.f32 0.0, %v221
    %v223 = vpop.f32.mrf.mxu0
    %224 = vdwg.mxu0
    %227 = vrot.lane.b32.xlu0 %v98, 124
    %v228 = vpop.permute.xlu0 %227
    %229 = vrot.lane.b32.xlu0 %v101, 124
    %v230 = vpop.permute.xlu0 %229
    %v233 = vmul.f32 %v217, %v228
    %v234 = vmul.f32 %v222, %v230
    %v235 = vsel %vm59, %v233, 0.0
    %v236 = vrot.slane %v235, 4
    %v237 = vadd.f32 %v235, %v236
    %v238 = vrot.slane %v237, 2
    %v239 = vadd.f32 %v237, %v238
    %v240 = vrot.slane %v239, 1
    %v241 = vadd.f32 %v239, %v240
    %v242 = vsel %vm59, %v234, 0.0
    %v243 = vrot.slane %v242, 4
    %v244 = vadd.f32 %v242, %v243
    %v245 = vrot.slane %v244, 2
    %v246 = vadd.f32 %v244, %v245
    %v247 = vrot.slane %v246, 1
    %v248 = vadd.f32 %v246, %v247
    %v249 = vsel %vm59, %v217, 0.0
    %v250 = vrot.slane %v249, 4
    %v251 = vadd.f32 %v249, %v250
    %v252 = vrot.slane %v251, 2
    %v253 = vadd.f32 %v251, %v252
    %v254 = vrot.slane %v253, 1
    %v255 = vadd.f32 %v253, %v254
    %v256 = vsel %vm59, %v222, 0.0
    %v257 = vrot.slane %v256, 4
    %v258 = vadd.f32 %v256, %v257
    %v259 = vrot.slane %v258, 2
    %v260 = vadd.f32 %v258, %v259
    %v261 = vrot.slane %v260, 1
    %v262 = vadd.f32 %v260, %v261
    %v263 = vrcp.pop %v255
    %v264 = vrcp.pop %v262
    %v265 = vmul.f32 %v241, %v263
    %v266 = vmul.f32 %v248, %v264
    %v267 = vld [vmem:[%s3] sm:$0x1]
    %v269 = vlaneseq
    %v270 = vshrl.u32 %v269, 7
    %v271 = vsub.s32 0, %v270
    %v272 = vrot.slane %v267, %v271
    %v274 = vadd.f32 %v265, %v272
    %v275 = vadd.f32 %v266, %v272
    %v278 = vrot.slane %v275, 7
    %vm279 = vcmask 1041409
    %v280 = vsel %vm279, %v278, %v274
    %vm282 = vcmask 254976
    %283 = vst.msk [vmem:[#allocation5] sm:$0x3] %vm282, %v280
    // Predicated region
    $region26: #{tpu_custom_call.1} parent=1 // pred_check
      _
    $region27: #{tpu_custom_call.1} parent=1 // pred_check_branch
      %285 = sbr.rel (0) target = $region29
    $region28: #{tpu_custom_call.1} parent=1 // pred_region
      %s287 = ssub.s32 32, 32
      %288 = vsyncadd [#allocation4], %s287
      %s290 = sshll.u32 [#allocation5], 4
      %s291 = int_to_ptr.vmem [resolvable:$true] %s290
      %293 = dma.vmem_to_hbm [thread:$0]  %s291, 32, %s5, [#allocation4]
    $region29: #{tpu_custom_call.1} parent=1 // pred_fallthru
      _
    // Predicated region
    $region30: #{tpu_custom_call.1} parent=1 // pred_check
      _
    $region31: #{tpu_custom_call.1} parent=1 // pred_check_branch
      %295 = sbr.rel (0) target = $region33
    $region32: #{tpu_custom_call.1} parent=1 // pred_region
      %296 = dma.done [#allocation4], 32
    $region33: #{tpu_custom_call.1} parent=1 // pred_fallthru
      _
    %297 = vsyncpa [#allocation3], 1
    %298 = vsyncpa [#allocation4], 1

</llo_original>
